<compile_context>
chip_gen: v5e
topology: v5e:2x2
jax: 0.10.0
libtpu: 0.0.40
codegen_flags: <defaults>
</compile_context>

<pallas_src>
import functools
import math
from types import SimpleNamespace

import jax
import jax.numpy as jnp
from jax import lax
from jax.experimental import pallas as pl
from jax.experimental.pallas import tpu as pltpu

_EPS = 1e-5
_LEAKY_SLOPE = 0.1
_VMEM_LIMIT = 32 * 1024 * 1024   # explicit scoped-VMEM budget (safe on v5e/v6e/v7x)


def _round_up(x, m):
    return ((x + m - 1) // m) * m


# ---------------------------------------------------------------------------
# Kernel 1: tiled MXU matmul
# ---------------------------------------------------------------------------
def _matmul_kernel(a_ref, b_ref, o_ref, acc_ref):
    @pl.when(pl.program_id(2) == 0)
    def _():
        acc_ref[...] = jnp.zeros_like(acc_ref)

    acc_ref[...] += jnp.dot(a_ref[...], b_ref[...],
                            preferred_element_type=jnp.float32)
    o_ref[...] = acc_ref[...].astype(o_ref.dtype)


def matmul_pallas(a, b, *, tm=256, tn=512, tk=512):
    """C = A @ B; inputs zero-padded up to sublane/lane aligned tiles, result sliced back."""
    m, k = a.shape
    k2, n = b.shape
    assert k == k2
    tm = min(tm, _round_up(m, 8))
    tk = min(tk, _round_up(k, 128))
    tn = min(tn, _round_up(n, 128))
    mp, kp, np_ = _round_up(m, tm), _round_up(k, tk), _round_up(n, tn)
    a_p = jnp.pad(a, ((0, mp - m), (0, kp - k)))
    b_p = jnp.pad(b, ((0, kp - k), (0, np_ - n)))
    out = pl.pallas_call(
        _matmul_kernel,
        out_shape=jax.ShapeDtypeStruct((mp, np_), a.dtype),
        grid_spec=pltpu.PrefetchScalarGridSpec(
            num_scalar_prefetch=0,
            grid=(mp // tm, np_ // tn, kp // tk),
            in_specs=[pl.BlockSpec((tm, tk), lambda i, j, kk: (i, kk)),
                      pl.BlockSpec((tk, tn), lambda i, j, kk: (kk, j))],
            out_specs=pl.BlockSpec((tm, tn), lambda i, j, kk: (i, j)),
            scratch_shapes=[pltpu.VMEM((tm, tn), jnp.float32)]),
        compiler_params=pltpu.CompilerParams(
            dimension_semantics=("parallel", "parallel", "arbitrary"),
            vmem_limit_bytes=_VMEM_LIMIT),
    )(a_p, b_p)
    return out[:m, :n]


# ---------------------------------------------------------------------------
# Kernel 2: per-channel mean / M2 over points (InstanceNorm stats), N tiled
# ---------------------------------------------------------------------------
def _in_stats_kernel(x_ref, mean_ref, m2_ref, *, tn, n_valid):
    j = pl.program_id(1)                                    # N-tile index (reduction axis)
    x = x_ref[...].astype(jnp.float32)                      # (TN, TC)
    row = lax.broadcasted_iota(jnp.int32, x.shape, 0) + j * tn
    valid = row < n_valid
    cnt = jnp.minimum(jnp.int32(tn), jnp.int32(n_valid) - j * tn).astype(jnp.float32)

    xm = jnp.where(valid, x, 0.0)
    t_mean = jnp.sum(xm, axis=0, keepdims=True) / cnt        # tile mean           (1, TC)
    cen = jnp.where(valid, x - t_mean, 0.0)
    t_m2 = jnp.sum(cen * cen, axis=0, keepdims=True)         # tile sum((x-mean)^2)

    @pl.when(j == 0)
    def _():
        mean_ref[...] = t_mean
        m2_ref[...] = t_m2

    @pl.when(j > 0)
    def _():
        # Chan parallel-variance merge (numerically stable, no sum-of-squares cancellation).
        n_a = jnp.float32(tn) * j.astype(jnp.float32)         # rows merged so far
        tot = n_a + cnt
        delta = t_mean - mean_ref[...]
        mean_ref[...] = mean_ref[...] + delta * (cnt / tot)
        m2_ref[...] = m2_ref[...] + t_m2 + (delta * delta) * (n_a * cnt / tot)


def _instance_norm_stats(x, *, tile_n=1024, tile_c=512):
    n, c = x.shape
    tc = min(tile_c, _round_up(c, 128))                       # lane-dense channel tiles
    tn = min(tile_n, _round_up(n, 8))
    np_, cp = _round_up(n, tn), _round_up(c, tc)
    x_p = jnp.pad(x, ((0, np_ - n), (0, cp - c)))
    kernel = functools.partial(_in_stats_kernel, tn=tn, n_valid=n)
    mean, m2 = pl.pallas_call(
        kernel,
        out_shape=(jax.ShapeDtypeStruct((1, cp), jnp.float32),
                   jax.ShapeDtypeStruct((1, cp), jnp.float32)),
        grid_spec=pltpu.PrefetchScalarGridSpec(
            num_scalar_prefetch=0,
            grid=(cp // tc, np_ // tn),                        # reduction (N) axis last
            in_specs=[pl.BlockSpec((tn, tc), lambda i, j: (j, i))],
            out_specs=(pl.BlockSpec((1, tc), lambda i, j: (0, i)),
                       pl.BlockSpec((1, tc), lambda i, j: (0, i)))),
        compiler_params=pltpu.CompilerParams(
            dimension_semantics=("parallel", "arbitrary"),
            vmem_limit_bytes=_VMEM_LIMIT),
    )(x_p)
    return mean[:, :c], m2[:, :c]


# ---------------------------------------------------------------------------
# Kernel 3: fused affine (+ residual) (+ LeakyReLU) elementwise pass, N and C tiled
# ---------------------------------------------------------------------------
def _affine_kernel(x_ref, scale_ref, shift_ref, o_ref, *, slope, fuse_lrelu):
    y = x_ref[...].astype(jnp.float32) * scale_ref[...] + shift_ref[...]
    if fuse_lrelu:
        y = jnp.where(y >= 0.0, y, slope * y)
    o_ref[...] = y.astype(o_ref.dtype)


def _affine_res_kernel(x_ref, scale_ref, shift_ref, r_ref, o_ref, *, slope, fuse_lrelu):
    y = (x_ref[...].astype(jnp.float32) * scale_ref[...] + shift_ref[...]
         + r_ref[...].astype(jnp.float32))
    if fuse_lrelu:
        y = jnp.where(y >= 0.0, y, slope * y)
    o_ref[...] = y.astype(o_ref.dtype)


def _affine_pallas(x, scale, shift, residual=None, *, fuse_lrelu=False,
                   slope=_LEAKY_SLOPE, tile_n=1024, tile_c=512):
    n, c = x.shape
    tc = min(tile_c, _round_up(c, 128))
    tn = min(tile_n, _round_up(n, 8))
    np_, cp = _round_up(n, tn), _round_up(c, tc)
    x_p = jnp.pad(x, ((0, np_ - n), (0, cp - c)))
    s_p = jnp.pad(scale.reshape(1, c).astype(jnp.float32), ((0, 0), (0, cp - c)))
    b_p = jnp.pad(shift.reshape(1, c).astype(jnp.float32), ((0, 0), (0, cp - c)))

    x_spec = pl.BlockSpec((tn, tc), lambda i, j: (i, j))
    v_spec = pl.BlockSpec((1, tc), lambda i, j: (0, j))       # (1,TC) vectors stay resident per C-tile

    if residual is None:
        kernel = functools.partial(_affine_kernel, slope=slope, fuse_lrelu=fuse_lrelu)
        in_specs = [x_spec, v_spec, v_spec]
        args = (x_p, s_p, b_p)
    else:
        r_p = jnp.pad(residual, ((0, np_ - n), (0, cp - c)))
        kernel = functools.partial(_affine_res_kernel, slope=slope, fuse_lrelu=fuse_lrelu)
        in_specs = [x_spec, v_spec, v_spec, x_spec]
        args = (x_p, s_p, b_p, r_p)

    out = pl.pallas_call(
        kernel,
        out_shape=jax.ShapeDtypeStruct((np_, cp), x.dtype),
        grid_spec=pltpu.PrefetchScalarGridSpec(
            num_scalar_prefetch=0,
            grid=(np_ // tn, cp // tc),
            in_specs=in_specs,
            out_specs=pl.BlockSpec((tn, tc), lambda i, j: (i, j))),
        compiler_params=pltpu.CompilerParams(
            dimension_semantics=("parallel", "parallel"),
            vmem_limit_bytes=_VMEM_LIMIT),
    )(*args)
    return out[:n, :c]


def instance_norm_pallas(x, *, fuse_lrelu=False, residual=None):
    """InstanceNorm1d over points per channel (biased var, eps=1e-5), apply pass fused with
    optional residual add and LeakyReLU(0.1)."""
    n, c = x.shape
    mean, m2 = _instance_norm_stats(x)
    var = m2 / float(n)
    inv_std = lax.rsqrt(var + _EPS)
    scale = inv_std.reshape(c)
    shift = (-mean * inv_std).reshape(c)
    return _affine_pallas(x, scale, shift, residual=residual, fuse_lrelu=fuse_lrelu)


# ---------------------------------------------------------------------------
# Module classes (forward semantics of the PyTorch blocks)
# ---------------------------------------------------------------------------
class BatchNormBlock:
    """InstanceNorm over points per channel (use_bn=True) or learned bias (use_bn=False)."""

    def __init__(self, in_dim, use_bn, bn_momentum):
        self.in_dim = in_dim
        self.use_bn = use_bn
        self.bn_momentum = bn_momentum   # stateless here (InstanceNorm1d, no running stats)
        if not use_bn:
            self.bias = jnp.zeros((in_dim,), jnp.float32)

    def __call__(self, x, *, fuse_lrelu=False, residual=None):
        if self.use_bn:
            return instance_norm_pallas(x, fuse_lrelu=fuse_lrelu, residual=residual)
        ones = jnp.ones((self.in_dim,), jnp.float32)
        return _affine_pallas(x, ones, self.bias, residual=residual, fuse_lrelu=fuse_lrelu)


class UnaryBlock:
    """Linear (no bias) -> BatchNormBlock -> optional LeakyReLU(0.1), norm/act/residual fused."""

    def __init__(self, key, in_dim, out_dim, use_bn, bn_momentum, no_relu=False):
        self.in_dim, self.out_dim, self.no_relu = in_dim, out_dim, no_relu
        bound = 1.0 / math.sqrt(in_dim)
        self.weight = jax.random.uniform(key, (in_dim, out_dim), jnp.float32, -bound, bound)
        self.batch_norm = BatchNormBlock(out_dim, use_bn, bn_momentum)

    def __call__(self, x, residual=None, force_lrelu=False):
        y = matmul_pallas(x, self.weight)
        fuse = (not self.no_relu) or force_lrelu
        return self.batch_norm(y, fuse_lrelu=fuse, residual=residual)


class KPConv:
    """Rigid KPConv.  The heavy kernel-weight GEMM runs as one Pallas matmul
    (N, K*Cin) @ (K*Cin, Cout), which also folds the sum over kernel points."""

    def __init__(self, key, kernel_size, p_dim, in_channels, out_channels, KP_extent, radius,
                 fixed_kernel_points='center', KP_influence='linear', aggregation_mode='sum'):
        self.K = kernel_size
        self.p_dim = p_dim
        self.in_channels = in_channels
        self.out_channels = out_channels
        self.KP_extent = KP_extent
        self.radius = radius
        self.KP_influence = KP_influence
        self.aggregation_mode = aggregation_mode
        kw, kp = jax.random.split(key)
        bound = 1.0 / math.sqrt(in_channels)
        self.weights = jax.random.uniform(
            kw, (kernel_size, in_channels, out_channels), jnp.float32, -bound, bound)
        # TODO(synk): load_kernels() Poisson-disk-optimized kernel dispositions are replaced by a
        # deterministic random-in-sphere layout with a fixed center point (forward math unchanged).
        dirs = jax.random.normal(kp, (kernel_size - 1, p_dim), jnp.float32)
        dirs = dirs / jnp.maximum(jnp.linalg.norm(dirs, axis=1, keepdims=True), 1e-9)
        radii = jax.random.uniform(jax.random.fold_in(kp, 1),
                                   (kernel_size - 1, 1), jnp.float32) ** (1.0 / p_dim)
        self.kernel_points = jnp.concatenate(
            [jnp.zeros((1, p_dim), jnp.float32), dirs * radii * radius], axis=0)

    def __call__(self, q_pts, s_pts, neighb_inds, x):
        # TODO(synk): deformable / modulated KPConv path is not implemented (rigid path only).
        s_pad = jnp.concatenate([s_pts, jnp.zeros_like(s_pts[:1, :]) + 1e6], axis=0)
        neighbors = s_pad[neighb_inds] - q_pts[:, None, :]                   # (N, H, 3)
        diffs = neighbors[:, :, None, :] - self.kernel_points[None, None]    # (N, H, K, 3)
        sq_d = jnp.sum(diffs * diffs, axis=3)                                # (N, H, K)

        if self.KP_influence == 'constant':
            all_w = jnp.ones_like(sq_d)
        elif self.KP_influence == 'linear':
            all_w = jnp.maximum(0.0, 1.0 - jnp.sqrt(sq_d) / self.KP_extent)
        elif self.KP_influence == 'gaussian':
            sig = self.KP_extent * 0.3
            all_w = jnp.exp(-sq_d / (2 * sig ** 2 + 1e-9))
        else:
            raise ValueError('Unknown influence function type')
        all_w = jnp.swapaxes(all_w, 1, 2)                                    # (N, K, H)

        if self.aggregation_mode == 'closest':
            nn1 = jnp.argmin(sq_d, axis=2)
            all_w = all_w * jnp.swapaxes(jax.nn.one_hot(nn1, self.K, dtype=all_w.dtype), 1, 2)
        elif self.aggregation_mode != 'sum':
            raise ValueError("Unknown convolution mode")

        x_pad = jnp.concatenate([x, jnp.zeros_like(x[:1, :])], axis=0)
        # TODO(synk): data-dependent neighbor gather + per-point (K,H)x(H,C) influence matmul
        # stay in XLA; a Pallas version would need manual DMA gather via scalar prefetch.
        neighb_x = x_pad[neighb_inds]                                        # (N, H, Cin)
        weighted = jnp.matmul(all_w, neighb_x)                               # (N, K, Cin)

        n = weighted.shape[0]
        out = matmul_pallas(weighted.reshape(n, self.K * self.in_channels),
                            self.weights.reshape(self.K * self.in_channels, self.out_channels))

        neighb_sum = jnp.sum(neighb_x, axis=-1)                              # (N, H)
        neighbor_num = jnp.maximum(jnp.sum(neighb_sum > 0.0, axis=-1), 1)
        return out / neighbor_num[:, None].astype(out.dtype)


def max_pool_jax(x, inds):
    x_pad = jnp.concatenate([x, jnp.zeros_like(x[:1, :])], axis=0)
    return jnp.max(x_pad[inds], axis=1)


class ResnetBottleneckBlock:
    def __init__(self, key, block_name, in_dim, out_dim, radius, layer_ind, config):
        current_extent = radius * config.KP_extent / config.conv_radius
        self.block_name = block_name
        self.layer_ind = layer_ind
        self.in_dim, self.out_dim = in_dim, out_dim
        use_bn, mom = config.use_batch_norm, config.batch_norm_momentum
        mid = out_dim // 4
        k1, k2, k3, k4 = jax.random.split(key, 4)
        self.unary1 = UnaryBlock(k1, in_dim, mid, use_bn, mom) if in_dim != mid else None
        self.KPConv = KPConv(k2, config.num_kernel_points, config.in_points_dim,
                             mid, mid, current_extent, radius,
                             fixed_kernel_points=config.fixed_kernel_points,
                             KP_influence=config.KP_influence,
                             aggregation_mode=config.aggregation_mode)
        self.batch_norm_conv = BatchNormBlock(mid, use_bn, mom)
        self.unary2 = UnaryBlock(k3, mid, out_dim, use_bn, mom, no_relu=True)
        self.unary_shortcut = (UnaryBlock(k4, in_dim, out_dim, use_bn, mom, no_relu=True)
                               if in_dim != out_dim else None)

    def __call__(self, features, batch):
        if 'strided' in self.block_name:
            q_pts = batch['points'][self.layer_ind + 1]
            s_pts = batch['points'][self.layer_ind]
            neighb_inds = batch['pools'][self.layer_ind]
        else:
            q_pts = batch['points'][self.layer_ind]
            s_pts = batch['points'][self.layer_ind]
            neighb_inds = batch['neighbors'][self.layer_ind]

        x = self.unary1(features) if self.unary1 is not None else features
        x = self.KPConv(q_pts, s_pts, neighb_inds, x)
        x = self.batch_norm_conv(x, fuse_lrelu=True)          # InstanceNorm + LeakyReLU fused

        if 'strided' in self.block_name:
            shortcut = max_pool_jax(features, neighb_inds)
        else:
            shortcut = features
        if self.unary_shortcut is not None:
            shortcut = self.unary_shortcut(shortcut)

        # unary2 matmul -> InstanceNorm, with the residual add and the final LeakyReLU fused
        # into the same elementwise pass (one HBM round trip instead of three).
        return self.unary2(x, residual=shortcut, force_lrelu=True)


# ---------------------------------------------------------------------------
# Pure-JAX reference (mirrors the PyTorch forward, use_bn=True / linear / sum path)
# ---------------------------------------------------------------------------
def _ref_lrelu(x):
    return jnp.where(x >= 0, x, _LEAKY_SLOPE * x)


def _ref_instnorm(x):
    m = jnp.mean(x, axis=0, keepdims=True)
    v = jnp.mean((x - m) ** 2, axis=0, keepdims=True)
    return (x - m) / jnp.sqrt(v + _EPS)


def _ref_kpconv(kp, q_pts, s_pts, neighb_inds, x):
    s_pad = jnp.concatenate([s_pts, jnp.zeros_like(s_pts[:1, :]) + 1e6], 0)
    neighbors = s_pad[neighb_inds] - q_pts[:, None, :]
    diffs = neighbors[:, :, None, :] - kp.kernel_points[None, None]
    sq_d = jnp.sum(diffs ** 2, axis=3)
    aw = jnp.maximum(0.0, 1.0 - jnp.sqrt(sq_d) / kp.KP_extent)
    aw = jnp.swapaxes(aw, 1, 2)
    x_pad = jnp.concatenate([x, jnp.zeros_like(x[:1, :])], 0)
    nx = x_pad[neighb_inds]
    wf = jnp.matmul(aw, nx)
    wf = jnp.transpose(wf, (1, 0, 2))
    ko = jnp.matmul(wf, kp.weights)
    out = jnp.sum(ko, axis=0)
    nnum = jnp.maximum(jnp.sum(jnp.sum(nx, -1) > 0.0, -1), 1)
    return out / nnum[:, None]


def _ref_block_forward(block, features, batch):
    q = batch['points'][block.layer_ind]
    ninds = batch['neighbors'][block.layer_ind]
    x = features
    if block.unary1 is not None:
        x = _ref_lrelu(_ref_instnorm(x @ block.unary1.weight))
    x = _ref_kpconv(block.KPConv, q, q, ninds, x)
    x = _ref_lrelu(_ref_instnorm(x))
    x = _ref_instnorm(x @ block.unary2.weight)
    sc = features
    if block.unary_shortcut is not None:
        sc = _ref_instnorm(sc @ block.unary_shortcut.weight)
    return _ref_lrelu(x + sc)


# ---------------------------------------------------------------------------
if __name__ == "__main__":
    key = jax.random.PRNGKey(0)
    k_feat, k_pts, k_inds, k_params = jax.random.split(key, 4)

    N, H = 40, 10              # points, neighbors per point
    in_dim, out_dim = 16, 64   # in_dim == out_dim // 4 -> unary1 is Identity (valid config)
    config = SimpleNamespace(
        num_kernel_points=15, in_points_dim=3, fixed_kernel_points='center',
        KP_influence='linear', aggregation_mode='sum', modulated=False,
        use_batch_norm=True, batch_norm_momentum=0.1,
        KP_extent=1.2, conv_radius=2.5)
    radius = 2.5               # -> current_extent = 1.2

    points = jax.random.uniform(k_pts, (N, 3), jnp.float32)
    features = jax.random.normal(k_feat, (N, in_dim), jnp.float32)
    neighb_inds = jax.random.randint(k_inds, (N, H), 0, N + 1)   # index N = "shadow" neighbor
    batch = {'points': [points], 'neighbors': [neighb_inds], 'pools': [neighb_inds]}

    block = ResnetBottleneckBlock(k_params, 'resnetb', in_dim, out_dim, radius, 0, config)
    out = block(features, batch)
    jax.block_until_ready(out)

    ref = _ref_block_forward(block, features, batch)
    assert out.shape == (N, out_dim)
    assert jnp.allclose(out, ref, atol=2e-2, rtol=2e-2), float(jnp.max(jnp.abs(out - ref)))
    print("KERNEL_OK")
</pallas_src>

<mosaic_0001>
module attributes {stable_mosaic.version = 11 : i64} {
  func.func @_matmul_kernel(%arg0: i32, %arg1: i32, %arg2: i32, %arg3: memref<40x256xf32, #tpu.memory_space<vmem>>, %arg4: memref<256x128xf32, #tpu.memory_space<vmem>>, %arg5: memref<40x128xf32, #tpu.memory_space<vmem>>, %arg6: memref<40x128xf32, #tpu.memory_space<vmem>>) attributes {dimension_semantics = [#tpu.dimension_semantics<parallel>, #tpu.dimension_semantics<parallel>, #tpu.dimension_semantics<arbitrary>], iteration_bounds = array<i64: 1, 1, 1>, scalar_prefetch = 0 : i64, scratch_operands = 1 : i64, tpu.core_type = #tpu.core_type<tc>, window_params = [{transform_indices = @transform_0, window_bounds = array<i64: 40, 256>}, {transform_indices = @transform_1, window_bounds = array<i64: 256, 128>}, {transform_indices = @transform_2, window_bounds = array<i64: 40, 128>}]} {
    %c0_i32 = arith.constant 0 : i32
    %0 = arith.cmpi eq, %arg2, %c0_i32 : i32
    %1 = arith.extui %0 : i1 to i32
    %c0_i32_0 = arith.constant 0 : i32
    %2 = arith.cmpi ne, %1, %c0_i32_0 : i32
    scf.if %2 {
      %cst_12 = arith.constant 0.000000e+00 : f32
      %11 = vector.broadcast %cst_12 : f32 to vector<40x128xf32>
      %c0_13 = arith.constant 0 : index
      %c0_14 = arith.constant 0 : index
      %12 = vector.load %arg6[%c0_13, %c0_14] : memref<40x128xf32, #tpu.memory_space<vmem>>, vector<40x128xf32>
      tpu.vector_store %arg6[%c0_13, %c0_14], %11 {strides = array<i32>} : memref<40x128xf32, #tpu.memory_space<vmem>>, vector<40x128xf32>,
    } else {
    }
    %c0 = arith.constant 0 : index
    %c0_1 = arith.constant 0 : index
    %3 = vector.load %arg6[%c0, %c0_1] : memref<40x128xf32, #tpu.memory_space<vmem>>, vector<40x128xf32>
    %c0_2 = arith.constant 0 : index
    %c0_3 = arith.constant 0 : index
    %4 = vector.load %arg3[%c0_2, %c0_3] : memref<40x256xf32, #tpu.memory_space<vmem>>, vector<40x256xf32>
    %c0_4 = arith.constant 0 : index
    %c0_5 = arith.constant 0 : index
    %5 = vector.load %arg4[%c0_4, %c0_5] : memref<256x128xf32, #tpu.memory_space<vmem>>, vector<256x128xf32>
    %cst = arith.constant dense<0.000000e+00> : vector<40x128xf32>
    %6 = tpu.matmul %4, %5, %cst {dimension_numbers = #tpu.dot_dimension_numbers<[1], [0], [0], [1], [0, 0, 1, 1], [], []>} : vector<40x256xf32>, vector<256x128xf32>, vector<40x128xf32> -> vector<40x128xf32>
    %7 = arith.addf %3, %6 : vector<40x128xf32>
    %c0_6 = arith.constant 0 : index
    %c0_7 = arith.constant 0 : index
    %8 = vector.load %arg6[%c0_6, %c0_7] : memref<40x128xf32, #tpu.memory_space<vmem>>, vector<40x128xf32>
    tpu.vector_store %arg6[%c0_6, %c0_7], %7 {strides = array<i32>} : memref<40x128xf32, #tpu.memory_space<vmem>>, vector<40x128xf32>,
    %c0_8 = arith.constant 0 : index
    %c0_9 = arith.constant 0 : index
    %9 = vector.load %arg6[%c0_8, %c0_9] : memref<40x128xf32, #tpu.memory_space<vmem>>, vector<40x128xf32>
    %c0_10 = arith.constant 0 : index
    %c0_11 = arith.constant 0 : index
    %10 = vector.load %arg5[%c0_10, %c0_11] : memref<40x128xf32, #tpu.memory_space<vmem>>, vector<40x128xf32>
    tpu.vector_store %arg5[%c0_10, %c0_11], %9 {strides = array<i32>} : memref<40x128xf32, #tpu.memory_space<vmem>>, vector<40x128xf32>,
    return
  }
  func.func @transform_0(%arg0: i32, %arg1: i32, %arg2: i32) -> (i32, i32) {
    %c0_i32 = arith.constant 0 : i32
    return %arg0, %arg2 : i32, i32
  }
  func.func @transform_1(%arg0: i32, %arg1: i32, %arg2: i32) -> (i32, i32) {
    %c0_i32 = arith.constant 0 : i32
    return %arg2, %arg1 : i32, i32
  }
  func.func @transform_2(%arg0: i32, %arg1: i32, %arg2: i32) -> (i32, i32) {
    %c0_i32 = arith.constant 0 : i32
    return %arg0, %arg1 : i32, i32
  }
}

</mosaic_0001>

<llo_original>
// kernel: tpu_custom_call.1
$region0: #{tpu_custom_call.1}
  #allocation0 [shape = 'u32[]', space=smem, size = 0x4, offset = 0x4, fixed_abs, tag = 'smem constant byte address 0x4 - core index']
  #allocation1 [shape = 'u32[72,128]{1,0:T(1,128)}', space=vmem, size = 0x9000, scoped, tag = 'internal scratch']
  #allocation2 [shape = 'f32[40,128]{1,0:T(8,128)}', space=vmem, size = 0x5000, scoped, tag = 'scratch operand']
  %s0 = inlined_call_operand.hbm [shape: f32[40,256], index: 0, kind: input, shape index: {}]
  %s1 = inlined_call_operand.hbm [shape: f32[256,128], index: 1, kind: input, shape index: {}]
  %s2 = inlined_call_operand.hbm [shape: f32[40,128], index: 2, kind: output, shape index: {}]
  %s3 = sld [smem:[#allocation0]]
  $region30: #{tpu_custom_call.1} parent=0
    _
  %s5 = ssub.s32 1, %s3
  %s6 = scalar_select 0, %s5, %s3
  $region1: #{tpu_custom_call.1} parent=0
    #allocation3 [shape = 'u8[40960]{0}', space=vmem, size = 0xa000, scoped, tag = 'input window, operand 0, single buffered']
    #allocation4 [shape = 's32[1]{0}', space=sflag, size = 0x4, scoped, tag = 'scoped memory for tpu_custom_call.1']
    #allocation5 [shape = 's32[1]{0}', space=sflag, size = 0x4, scoped, tag = 'scoped memory for tpu_custom_call.1']
    #allocation6 [shape = 'u8[131072]{0}', space=vmem, size = 0x20000, scoped, tag = 'input window, operand 1, single buffered']
    #allocation7 [shape = 's32[1]{0}', space=sflag, size = 0x4, scoped, tag = 'scoped memory for tpu_custom_call.1']
    #allocation8 [shape = 'u8[20480]{0}', space=vmem, size = 0x5000, scoped, tag = 'output window, operand 0, single buffered']
    %7 = vsyncpa [#allocation4], 0
    %8 = vsyncpa [#allocation7], 0
    %9 = vsyncpa [#allocation5], 0
    // Predicated region
    $region2: #{tpu_custom_call.1} parent=1 // pred_check
      _
    $region3: #{tpu_custom_call.1} parent=1 // pred_check_branch
      %11 = sbr.rel (0) target = $region5
    $region4: #{tpu_custom_call.1} parent=1 // pred_region
      %13 = vsyncadd [#allocation4], 0
      %s14 = sshll.u32 %s0, 4
      %s15 = int_to_ptr.hbm [resolvable:$true] %s14
      %s16 = sshll.u32 [#allocation3], 4
      %s17 = int_to_ptr.vmem [resolvable:$true] %s16
      %22 = dma.hbm_to_vmem [thread:$0]  %s15, 1280, %s17, [#allocation4], 256, 256, 16
    $region5: #{tpu_custom_call.1} parent=1 // pred_fallthru
      _
    // Predicated region
    $region6: #{tpu_custom_call.1} parent=1 // pred_check
      _
    $region7: #{tpu_custom_call.1} parent=1 // pred_check_branch
      %24 = sbr.rel (0) target = $region9
    $region8: #{tpu_custom_call.1} parent=1 // pred_region
      %26 = vsyncadd [#allocation7], 0
      %s27 = sshll.u32 %s1, 4
      %s28 = int_to_ptr.hbm [resolvable:$true] %s27
      %s29 = sshll.u32 [#allocation6], 4
      %s30 = int_to_ptr.vmem [resolvable:$true] %s29
      %35 = dma.hbm_to_vmem [thread:$0]  %s28, 4096, %s30, [#allocation7], 128, 128, 8
    $region9: #{tpu_custom_call.1} parent=1 // pred_fallthru
      _
    // Predicated region
    $region10: #{tpu_custom_call.1} parent=1 // pred_check
      _
    $region11: #{tpu_custom_call.1} parent=1 // pred_check_branch
      %37 = sbr.rel (0) target = $region13
    $region12: #{tpu_custom_call.1} parent=1 // pred_region
      %39 = dma.done [#allocation4], 1280
    $region13: #{tpu_custom_call.1} parent=1 // pred_fallthru
      _
    // Predicated region
    $region14: #{tpu_custom_call.1} parent=1 // pred_check
      _
    $region15: #{tpu_custom_call.1} parent=1 // pred_check_branch
      %41 = sbr.rel (0) target = $region17
    $region16: #{tpu_custom_call.1} parent=1 // pred_region
      %43 = dma.done [#allocation7], 4096
    $region17: #{tpu_custom_call.1} parent=1 // pred_fallthru
      _
    %p44 = scmp.eq.s32.totalorder 0, 0
    // Predicated region
    $region18: #{tpu_custom_call.1} parent=1 // pred_check
      %p45 = pneg %p44
    $region19: #{tpu_custom_call.1} parent=1 // pred_check_branch
      %47 = sbr.rel (%p45) target = $region21
    $region20: #{tpu_custom_call.1} parent=1 // pred_region
      %48 = vst [vmem:[#allocation2] sm:$0xff] 0.0
      %49 = vst [vmem:[#allocation2 + $0x8] sm:$0xff] 0.0
      %50 = vst [vmem:[#allocation2 + $0x10] sm:$0xff] 0.0
      %51 = vst [vmem:[#allocation2 + $0x18] sm:$0xff] 0.0
      %52 = vst [vmem:[#allocation2 + $0x20] sm:$0xff] 0.0
    $region21: #{tpu_custom_call.1} parent=1 // pred_fallthru
      _
    %v53 = vld [vmem:[#allocation2] sm:$0xff]
    %v54 = vld [vmem:[#allocation2 + $0x8] sm:$0xff]
    %v55 = vld [vmem:[#allocation2 + $0x10] sm:$0xff]
    %v56 = vld [vmem:[#allocation2 + $0x18] sm:$0xff]
    %v57 = vld [vmem:[#allocation2 + $0x20] sm:$0xff]
    %v58 = vld [vmem:[#allocation3] sm:$0xff]
    %v59 = vld [vmem:[#allocation3 + $0x8] sm:$0xff]
    %v60 = vld [vmem:[#allocation3 + $0x10] sm:$0xff]
    %v61 = vld [vmem:[#allocation3 + $0x18] sm:$0xff]
    %v62 = vld [vmem:[#allocation3 + $0x20] sm:$0xff]
    %v63 = vld [vmem:[#allocation3 + $0x28] sm:$0xff]
    %v64 = vld [vmem:[#allocation3 + $0x30] sm:$0xff]
    %v65 = vld [vmem:[#allocation3 + $0x38] sm:$0xff]
    %v66 = vld [vmem:[#allocation3 + $0x40] sm:$0xff]
    %v67 = vld [vmem:[#allocation3 + $0x48] sm:$0xff]
    %v68 = vld [vmem:[#allocation6] sm:$0xff]
    %v69 = vld [vmem:[#allocation6 + $0x8] sm:$0xff]
    %v70 = vld [vmem:[#allocation6 + $0x10] sm:$0xff]
    %v71 = vld [vmem:[#allocation6 + $0x18] sm:$0xff]
    %v72 = vld [vmem:[#allocation6 + $0x20] sm:$0xff]
    %v73 = vld [vmem:[#allocation6 + $0x28] sm:$0xff]
    %v74 = vld [vmem:[#allocation6 + $0x30] sm:$0xff]
    %v75 = vld [vmem:[#allocation6 + $0x38] sm:$0xff]
    %v76 = vld [vmem:[#allocation6 + $0x40] sm:$0xff]
    %v77 = vld [vmem:[#allocation6 + $0x48] sm:$0xff]
    %v78 = vld [vmem:[#allocation6 + $0x50] sm:$0xff]
    %v79 = vld [vmem:[#allocation6 + $0x58] sm:$0xff]
    %v80 = vld [vmem:[#allocation6 + $0x60] sm:$0xff]
    %v81 = vld [vmem:[#allocation6 + $0x68] sm:$0xff]
    %v82 = vld [vmem:[#allocation6 + $0x70] sm:$0xff]
    %v83 = vld [vmem:[#allocation6 + $0x78] sm:$0xff]
    %v84 = vld [vmem:[#allocation6 + $0x80] sm:$0xff]
    %v85 = vld [vmem:[#allocation6 + $0x88] sm:$0xff]
    %v86 = vld [vmem:[#allocation6 + $0x90] sm:$0xff]
    %v87 = vld [vmem:[#allocation6 + $0x98] sm:$0xff]
    %v88 = vld [vmem:[#allocation6 + $0xa0] sm:$0xff]
    %v89 = vld [vmem:[#allocation6 + $0xa8] sm:$0xff]
    %v90 = vld [vmem:[#allocation6 + $0xb0] sm:$0xff]
    %v91 = vld [vmem:[#allocation6 + $0xb8] sm:$0xff]
    %v92 = vld [vmem:[#allocation6 + $0xc0] sm:$0xff]
    %v93 = vld [vmem:[#allocation6 + $0xc8] sm:$0xff]
    %v94 = vld [vmem:[#allocation6 + $0xd0] sm:$0xff]
    %v95 = vld [vmem:[#allocation6 + $0xd8] sm:$0xff]
    %v96 = vld [vmem:[#allocation6 + $0xe0] sm:$0xff]
    %v97 = vld [vmem:[#allocation6 + $0xe8] sm:$0xff]
    %v98 = vld [vmem:[#allocation6 + $0xf0] sm:$0xff]
    %v99 = vld [vmem:[#allocation6 + $0xf8] sm:$0xff]
    %100 = vmatpush.msra.mxu0 %v83
    %101 = vmatpush.msra.mxu0 %v82
    %102 = vmatpush.msra.mxu0 %v81
    %103 = vmatpush.msra.mxu0 %v80
    %104 = vmatpush.msra.mxu0 %v79
    %105 = vmatpush.msra.mxu0 %v78
    %106 = vmatpush.msra.mxu0 %v77
    %107 = vmatpush.msra.mxu0 %v76
    %108 = vmatpush.msra.mxu0 %v75
    %109 = vmatpush.msra.mxu0 %v74
    %110 = vmatpush.msra.mxu0 %v73
    %111 = vmatpush.msra.mxu0 %v72
    %112 = vmatpush.msra.mxu0 %v71
    %113 = vmatpush.msra.mxu0 %v70
    %114 = vmatpush.msra.mxu0 %v69
    %115 = vmatpush.msra.mxu0 %v68
    %116 = vmatmul.f32.gmra.mxu0 %v58
    %v117 = vpop.f32.mrf.mxu0
    %v118 = vadd.f32 0.0, %v117
    %119 = vmatmul.f32.gmra.mxu0 %v60
    %v120 = vpop.f32.mrf.mxu0
    %v121 = vadd.f32 0.0, %v120
    %122 = vmatmul.f32.gmra.mxu0 %v62
    %v123 = vpop.f32.mrf.mxu0
    %v124 = vadd.f32 0.0, %v123
    %125 = vmatmul.f32.gmra.mxu0 %v64
    %v126 = vpop.f32.mrf.mxu0
    %v127 = vadd.f32 0.0, %v126
    %128 = vmatmul.f32.gmra.mxu0 %v66
    %v129 = vpop.f32.mrf.mxu0
    %v130 = vadd.f32 0.0, %v129
    %131 = vdwg.mxu0
    %132 = vmatpush.msra.mxu0 %v99
    %133 = vmatpush.msra.mxu0 %v98
    %134 = vmatpush.msra.mxu0 %v97
    %135 = vmatpush.msra.mxu0 %v96
    %136 = vmatpush.msra.mxu0 %v95
    %137 = vmatpush.msra.mxu0 %v94
    %138 = vmatpush.msra.mxu0 %v93
    %139 = vmatpush.msra.mxu0 %v92
    %140 = vmatpush.msra.mxu0 %v91
    %141 = vmatpush.msra.mxu0 %v90
    %142 = vmatpush.msra.mxu0 %v89
    %143 = vmatpush.msra.mxu0 %v88
    %144 = vmatpush.msra.mxu0 %v87
    %145 = vmatpush.msra.mxu0 %v86
    %146 = vmatpush.msra.mxu0 %v85
    %147 = vmatpush.msra.mxu0 %v84
    %148 = vmatmul.f32.gmra.mxu0 %v59
    %v149 = vpop.f32.mrf.mxu0
    %v150 = vadd.f32 %v118, %v149
    %151 = vmatmul.f32.gmra.mxu0 %v61
    %v152 = vpop.f32.mrf.mxu0
    %v153 = vadd.f32 %v121, %v152
    %154 = vmatmul.f32.gmra.mxu0 %v63
    %v155 = vpop.f32.mrf.mxu0
    %v156 = vadd.f32 %v124, %v155
    %157 = vmatmul.f32.gmra.mxu0 %v65
    %v158 = vpop.f32.mrf.mxu0
    %v159 = vadd.f32 %v127, %v158
    %160 = vmatmul.f32.gmra.mxu0 %v67
    %v161 = vpop.f32.mrf.mxu0
    %v162 = vadd.f32 %v130, %v161
    %163 = vdwg.mxu0
    %v164 = vadd.f32 %v53, %v150
    %v165 = vadd.f32 %v54, %v153
    %v166 = vadd.f32 %v55, %v156
    %v167 = vadd.f32 %v56, %v159
    %v168 = vadd.f32 %v57, %v162
    %169 = vst [vmem:[#allocation2] sm:$0xff] %v164
    %170 = vst [vmem:[#allocation2 + $0x8] sm:$0xff] %v165
    %171 = vst [vmem:[#allocation2 + $0x10] sm:$0xff] %v166
    %172 = vst [vmem:[#allocation2 + $0x18] sm:$0xff] %v167
    %173 = vst [vmem:[#allocation2 + $0x20] sm:$0xff] %v168
    %v174 = vld [vmem:[#allocation2] sm:$0xff]
    %v175 = vld [vmem:[#allocation2 + $0x8] sm:$0xff]
    %v176 = vld [vmem:[#allocation2 + $0x10] sm:$0xff]
    %v177 = vld [vmem:[#allocation2 + $0x18] sm:$0xff]
    %v178 = vld [vmem:[#allocation2 + $0x20] sm:$0xff]
    %179 = vst [vmem:[#allocation8] sm:$0xff] %v174
    %180 = vst [vmem:[#allocation8 + $0x8] sm:$0xff] %v175
    %181 = vst [vmem:[#allocation8 + $0x10] sm:$0xff] %v176
    %182 = vst [vmem:[#allocation8 + $0x18] sm:$0xff] %v177
    %183 = vst [vmem:[#allocation8 + $0x20] sm:$0xff] %v178
    // Predicated region
    $region22: #{tpu_custom_call.1} parent=1 // pred_check
      _
    $region23: #{tpu_custom_call.1} parent=1 // pred_check_branch
      %185 = sbr.rel (0) target = $region25
    $region24: #{tpu_custom_call.1} parent=1 // pred_region
      %187 = vsyncadd [#allocation5], 0
      %s188 = sshll.u32 [#allocation8], 4
      %s189 = int_to_ptr.vmem [resolvable:$true] %s188
      %s190 = sshll.u32 %s2, 4
      %s191 = int_to_ptr.hbm [resolvable:$true] %s190
      %196 = dma.vmem_to_hbm [thread:$0]  %s189, 640, %s191, [#allocation5], 128, 128, 8
    $region25: #{tpu_custom_call.1} parent=1 // pred_fallthru
      _
    // Predicated region
    $region26: #{tpu_custom_call.1} parent=1 // pred_check
      _
    $region27: #{tpu_custom_call.1} parent=1 // pred_check_branch
      %198 = sbr.rel (0) target = $region29
    $region28: #{tpu_custom_call.1} parent=1 // pred_region
      %200 = dma.done [#allocation5], 640
    $region29: #{tpu_custom_call.1} parent=1 // pred_fallthru
      _
    %201 = vsyncpa [#allocation4], 1
    %202 = vsyncpa [#allocation7], 1
    %203 = vsyncpa [#allocation5], 1

</llo_original>
